<compile_context>
chip_gen: v7x
topology: tpu7x:2x2x1
jax: 0.10.0
libtpu: 0.0.40
codegen_flags: <defaults>
</compile_context>

<pallas_src>
import functools

import jax
import jax.numpy as jnp
from jax import lax
from jax.experimental import pallas as pl
from jax.experimental.pallas import tpu as pltpu


def _round_up(x, m):
    return ((x + m - 1) // m) * m


def _pick_tile(n, cap):
    """Largest multiple of 128 that divides n and is <= cap (n is a multiple of 128)."""
    cap = max(128, min(cap, n))
    best = 128
    t = 128
    while t <= cap:
        if n % t == 0:
            best = t
        t += 128
    return best


# ---------------------------------------------------------------------------
# Kernel 1: Wh = h @ W.T + b  (row-tiled linear; also emits the mm_dtype copy)
# ---------------------------------------------------------------------------
def _linear_kernel(h_ref, wt_ref, b_ref, wh_ref, whm_ref):
    acc = (
        jnp.dot(h_ref[...], wt_ref[...], preferred_element_type=jnp.float32)
        + b_ref[...]
    )
    wh_ref[...] = acc
    whm_ref[...] = acc.astype(whm_ref.dtype)


# ---------------------------------------------------------------------------
# Kernel 2: cosine attention + fused signed propagation, column-tile reduction
# ---------------------------------------------------------------------------
def _ggcn_attention_kernel(params_ref, wh_row_ref, whm_row_ref, whm_col_ref,
                           masked_ref, out_ref):
    j = pl.program_id(1)
    nj = pl.num_programs(1)

    c0 = params_ref[0]      # softmax(coeff)[0]
    c1 = params_ref[1]      # softmax(coeff)[1]
    c2 = params_ref[2]      # softmax(coeff)[2]
    scale = params_ref[3]   # softplus(scale)

    # Gram block Wh_i . Wh_j^T, contracting the trailing feature axes directly
    # on the MXU (no explicit transpose of the (tn, F) operand).
    # TODO(synk): if the Mosaic dump shows a per-block vxpose here, feed a
    # pre-transposed (F, tn) Wh input instead.
    prod = lax.dot_general(
        whm_row_ref[...], whm_col_ref[...],
        dimension_numbers=(((1,), (1,)), ((), ())),
        preferred_element_type=jnp.float32,
    )                                                              # (tm, tn)

    # masked_ref already carries adj * softplus(deg) * inv||Wh_i|| * inv||Wh_j||
    # with diagonal and padded region zeroed, so att == e * adj * sc.
    att = prod * masked_ref[...].astype(jnp.float32)

    # c0*relu(att) + c1*(-relu(-att)) == att * where(att >= 0, c0, c1)
    blended = (att * jnp.where(att >= 0.0, c0, c1)).astype(whm_col_ref.dtype)
    contrib = jnp.dot(blended, whm_col_ref[...],
                      preferred_element_type=jnp.float32)          # (tm, F)

    @pl.when(j == 0)
    def _():
        out_ref[...] = jnp.zeros_like(out_ref)

    @pl.when(j != nj - 1)
    def _():
        out_ref[...] += contrib

    @pl.when(j == nj - 1)
    def _():
        out_ref[...] = scale * (out_ref[...] + contrib + c2 * wh_row_ref[...])


# ---------------------------------------------------------------------------
# Wrapper
# ---------------------------------------------------------------------------
def ggcn_layer(h, adj, degree_precompute, W, b, deg_coeff, coeff, scale_param,
               *, mm_dtype=jnp.bfloat16, mask_dtype=None,
               tile_m=None, tile_n=None):
    """Pallas implementation of GGCNlayer.forward (use_degree=use_sign=use_decay=True).

    mm_dtype:   MXU operand dtype (bfloat16 default = fast path on v5e/v6e/v7x;
                float32 = exact path).  Accumulation is always f32.
    mask_dtype: dtype of the precomputed masked_scale stream (defaults to mm_dtype).
    """
    f32 = jnp.float32
    if mask_dtype is None:
        mask_dtype = mm_dtype

    N, fin = h.shape
    fout, fin_w = W.shape
    assert fin_w == fin

    # lane/sublane-friendly zero padding
    fin_p = max(128, _round_up(fin, 128))
    fout_p = max(128, _round_up(fout, 128))
    n_p = max(128, _round_up(N, 128))

    h_p = jnp.zeros((n_p, fin_p), f32).at[:N, :fin].set(h.astype(f32))
    wt_p = jnp.zeros((fin_p, fout_p), f32).at[:fin, :fout].set(W.T.astype(f32))
    b_p = jnp.zeros((1, fout_p), f32).at[0, :fout].set(b.astype(f32))

    # tiny learnable-mixing glue, packed for SMEM: [c0, c1, c2, softplus(scale)]
    coeff_sm = jax.nn.softmax(coeff.astype(f32))
    scale_sp = jax.nn.softplus(scale_param.astype(f32)).reshape(-1)[:1]
    params = jnp.concatenate([coeff_sm, scale_sp])                    # (4,)

    # ---- kernel 1: Wh = h @ W.T + b (f32 + mm_dtype copies) ----
    tile_1 = _pick_tile(n_p, 512)
    wh, wh_mm = pl.pallas_call(
        _linear_kernel,
        out_shape=(jax.ShapeDtypeStruct((n_p, fout_p), f32),
                   jax.ShapeDtypeStruct((n_p, fout_p), mm_dtype)),
        grid=(n_p // tile_1,),
        in_specs=[
            pl.BlockSpec((tile_1, fin_p), lambda i: (i, 0)),
            pl.BlockSpec((fin_p, fout_p), lambda i: (0, 0)),
            pl.BlockSpec((1, fout_p), lambda i: (0, 0)),
        ],
        out_specs=(pl.BlockSpec((tile_1, fout_p), lambda i: (i, 0)),
                   pl.BlockSpec((tile_1, fout_p), lambda i: (i, 0))),
        compiler_params=pltpu.CompilerParams(
            dimension_semantics=("parallel",)),
    )(h_p, wt_p, b_p)

    # ---- fused masked_scale precompute (single XLA elementwise pass) ----
    # adj * softplus(d0*deg + d1) * inv-norm outer product, diagonal zeroed,
    # padded region zeroed (neutralizes padded Wh rows which equal the bias).
    norm = jnp.sqrt(jnp.sum(wh[:N] * wh[:N], axis=-1))
    inv = 1.0 / jnp.maximum(norm, 1e-9)
    sc = jax.nn.softplus(deg_coeff[0].astype(f32) * degree_precompute.astype(f32)
                         + deg_coeff[1].astype(f32))
    idx = jnp.arange(N)
    off_diag = idx[:, None] != idx[None, :]
    mask = jnp.where(off_diag,
                     adj.astype(f32) * sc * (inv[:, None] * inv[None, :]),
                     0.0)
    masked_p = jnp.zeros((n_p, n_p), mask_dtype).at[:N, :N].set(
        mask.astype(mask_dtype))

    # ---- tile selection: asymmetric; >= 2 row tiles when possible (v7x 2 TCs) ----
    tm = tile_m if tile_m is not None else _pick_tile(n_p, min(1024, n_p // 2))
    tn = tile_n if tile_n is not None else _pick_tile(n_p, 2048)
    assert n_p % tm == 0 and tm % 128 == 0
    assert n_p % tn == 0 and tn % 128 == 0
    ni, nj = n_p // tm, n_p // tn

    mm_b = jnp.dtype(mm_dtype).itemsize
    mask_b = jnp.dtype(mask_dtype).itemsize

    # live VMEM (double-buffered streams + resident output), with 2x headroom,
    # capped so it also fits v7x's 64 MiB physical VMEM.
    live = 2 * (tm * tn * mask_b            # masked_scale stream
                + tn * fout_p * mm_b        # Wh column stream
                + tm * fout_p * (4 + mm_b)  # Wh row blocks (f32 + mm_dtype)
                + tm * fout_p * 4)          # output block
    vmem_limit = int(min(56 * 1024 * 1024, max(32 * 1024 * 1024, 2 * live)))

    cost = pl.CostEstimate(
        flops=int(4 * n_p * n_p * fout_p),           # Gram matmul + propagation matmul
        transcendentals=0,                           # softplus/rsqrt hoisted to wrapper
        bytes_accessed=int(n_p * n_p * mask_b
                           + ni * n_p * fout_p * mm_b
                           + n_p * fout_p * (8 + 2 * mm_b)),
    )

    out_p = pl.pallas_call(
        _ggcn_attention_kernel,
        out_shape=jax.ShapeDtypeStruct((n_p, fout_p), f32),
        grid=(ni, nj),
        in_specs=[
            pl.BlockSpec(memory_space=pltpu.MemorySpace.SMEM),       # params (4,)
            pl.BlockSpec((tm, fout_p), lambda i, j: (i, 0)),         # Wh row (f32)
            pl.BlockSpec((tm, fout_p), lambda i, j: (i, 0)),         # Wh row (mm)
            pl.BlockSpec((tn, fout_p), lambda i, j: (j, 0)),         # Wh col (mm)
            pl.BlockSpec((tm, tn), lambda i, j: (i, j)),             # masked_scale
        ],
        out_specs=pl.BlockSpec((tm, fout_p), lambda i, j: (i, 0)),
        compiler_params=pltpu.CompilerParams(
            dimension_semantics=("parallel", "arbitrary"),
            vmem_limit_bytes=vmem_limit,
        ),
        cost_estimate=cost,
    )(params, wh, wh_mm, wh_mm, masked_p)

    return out_p[:N, :fout]


# ---------------------------------------------------------------------------
# Pure-JAX reference mirroring the PyTorch forward
# ---------------------------------------------------------------------------
def ggcn_reference(h, adj, degree_precompute, W, b, deg_coeff, coeff, scale_param):
    sc = jax.nn.softplus(deg_coeff[0] * degree_precompute + deg_coeff[1])
    Wh = h @ W.T + b
    prod = Wh @ Wh.T
    sq = jnp.diag(prod)[:, None]
    scaling = sq @ sq.T
    e = prod / jnp.maximum(jnp.sqrt(scaling), 1e-9)
    e = e - jnp.diag(jnp.diag(e))
    attention = e * adj * sc
    attention_pos = jnp.maximum(attention, 0.0)
    attention_neg = -jnp.maximum(-attention, 0.0)
    prop_pos = attention_pos @ Wh
    prop_neg = attention_neg @ Wh
    c = jax.nn.softmax(coeff)
    s = jax.nn.softplus(scale_param)
    return s * (c[0] * prop_pos + c[1] * prop_neg + c[2] * Wh)


if __name__ == "__main__":
    key = jax.random.PRNGKey(0)
    k_h, k_adj, k_deg, k_w, k_b = jax.random.split(key, 5)

    # small, non-aligned shapes to exercise padding + the multi-tile grid
    N = 300
    in_features = 48
    out_features = 64

    h = jax.random.normal(k_h, (N, in_features), dtype=jnp.float32)
    adj = (jax.random.uniform(k_adj, (N, N)) > 0.7).astype(jnp.float32)
    adj = jnp.maximum(adj, adj.T)                     # symmetric adjacency
    degree_precompute = jax.random.uniform(k_deg, (N, N), dtype=jnp.float32)

    # parameters as in GGCNlayer.__init__ (use_degree=use_sign=use_decay=True)
    bound = 1.0 / jnp.sqrt(in_features)
    W = jax.random.uniform(k_w, (out_features, in_features),
                           minval=-bound, maxval=bound, dtype=jnp.float32)
    b = jax.random.uniform(k_b, (out_features,),
                           minval=-bound, maxval=bound, dtype=jnp.float32)
    deg_coeff = jnp.array([0.5, 0.0], dtype=jnp.float32)
    coeff = jnp.zeros((3,), dtype=jnp.float32)
    scale_param = 2.0 * jnp.ones((1,), dtype=jnp.float32)

    with jax.default_matmul_precision("highest"):
        ref = ggcn_reference(h, adj, degree_precompute, W, b, deg_coeff, coeff,
                             scale_param)

    # default bf16 MXU-operand / bf16 mask fast path (v5e / v6e / v7x)
    out_bf16 = ggcn_layer(h, adj, degree_precompute, W, b, deg_coeff, coeff,
                          scale_param)
    out_bf16 = jax.block_until_ready(out_bf16)
    assert out_bf16.shape == (N, out_features)
    rel_err = jnp.max(jnp.abs(out_bf16 - ref)) / (jnp.max(jnp.abs(ref)) + 1e-9)
    assert rel_err < 5e-2, f"bf16 kernel relative error too large: {rel_err}"

    # f32 exact path
    out_f32 = ggcn_layer(h, adj, degree_precompute, W, b, deg_coeff, coeff,
                         scale_param, mm_dtype=jnp.float32)
    out_f32 = jax.block_until_ready(out_f32)
    assert jnp.allclose(out_f32, ref, atol=2e-3, rtol=2e-3), \
        "f32 kernel mismatch vs reference"

    # force a multi-tile reduction axis (nj > 1) to exercise the accumulate +
    # fused-finalize path
    out_multi = ggcn_layer(h, adj, degree_precompute, W, b, deg_coeff, coeff,
                           scale_param, mm_dtype=jnp.float32, tile_n=128)
    out_multi = jax.block_until_ready(out_multi)
    assert jnp.allclose(out_multi, ref, atol=2e-3, rtol=2e-3), \
        "multi-column-tile kernel mismatch vs reference"

    print("KERNEL_OK")
</pallas_src>

<mosaic_0001>
module attributes {stable_mosaic.version = 11 : i64} {
  func.func @_linear_kernel(%arg0: i32, %arg1: memref<384x128xf32, #tpu.memory_space<vmem>>, %arg2: memref<128x128xf32, #tpu.memory_space<vmem>>, %arg3: memref<1x128xf32, #tpu.memory_space<vmem>>, %arg4: memref<384x128xf32, #tpu.memory_space<vmem>>, %arg5: memref<384x128xbf16, #tpu.memory_space<vmem>>) attributes {dimension_semantics = [#tpu.dimension_semantics<parallel>], iteration_bounds = array<i64: 1>, scalar_prefetch = 0 : i64, scratch_operands = 0 : i64, tpu.core_type = #tpu.core_type<tc>, window_params = [{transform_indices = @transform_0, window_bounds = array<i64: 384, 128>}, {pipeline_mode = #tpu.pipeline_mode<synchronous>, transform_indices = @transform_1, window_bounds = array<i64: 128, 128>}, {pipeline_mode = #tpu.pipeline_mode<synchronous>, transform_indices = @transform_2, window_bounds = array<i64: 1, 128>}, {transform_indices = @transform_3, window_bounds = array<i64: 384, 128>}, {transform_indices = @transform_4, window_bounds = array<i64: 384, 128>}]} {
    %c0 = arith.constant 0 : index
    %c0_0 = arith.constant 0 : index
    %0 = vector.load %arg1[%c0, %c0_0] : memref<384x128xf32, #tpu.memory_space<vmem>>, vector<384x128xf32>
    %c0_1 = arith.constant 0 : index
    %c0_2 = arith.constant 0 : index
    %1 = vector.load %arg2[%c0_1, %c0_2] : memref<128x128xf32, #tpu.memory_space<vmem>>, vector<128x128xf32>
    %cst = arith.constant dense<0.000000e+00> : vector<384x128xf32>
    %2 = tpu.matmul %0, %1, %cst {dimension_numbers = #tpu.dot_dimension_numbers<[1], [0], [0], [1], [0, 0, 1, 1], [], []>} : vector<384x128xf32>, vector<128x128xf32>, vector<384x128xf32> -> vector<384x128xf32>
    %c0_3 = arith.constant 0 : index
    %c0_4 = arith.constant 0 : index
    %3 = vector.load %arg3[%c0_3, %c0_4] : memref<1x128xf32, #tpu.memory_space<vmem>>, vector<1x128xf32>
    %4 = vector.broadcast %3 : vector<1x128xf32> to vector<384x128xf32>
    %5 = arith.addf %2, %4 : vector<384x128xf32>
    %c0_5 = arith.constant 0 : index
    %c0_6 = arith.constant 0 : index
    %6 = vector.load %arg4[%c0_5, %c0_6] : memref<384x128xf32, #tpu.memory_space<vmem>>, vector<384x128xf32>
    tpu.vector_store %arg4[%c0_5, %c0_6], %5 {strides = array<i32>} : memref<384x128xf32, #tpu.memory_space<vmem>>, vector<384x128xf32>,
    %7 = arith.truncf %5 : vector<384x128xf32> to vector<384x128xbf16>
    %c0_7 = arith.constant 0 : index
    %c0_8 = arith.constant 0 : index
    %8 = vector.load %arg5[%c0_7, %c0_8] : memref<384x128xbf16, #tpu.memory_space<vmem>>, vector<384x128xbf16>
    tpu.vector_store %arg5[%c0_7, %c0_8], %7 {strides = array<i32>} : memref<384x128xbf16, #tpu.memory_space<vmem>>, vector<384x128xbf16>,
    return
  }
  func.func @transform_0(%arg0: i32) -> (i32, i32) {
    %c0_i32 = arith.constant 0 : i32
    %c0_i32_0 = arith.constant 0 : i32
    return %arg0, %c0_i32 : i32, i32
  }
  func.func @transform_1(%arg0: i32) -> (i32, i32) {
    %c0_i32 = arith.constant 0 : i32
    %c0_i32_0 = arith.constant 0 : i32
    %c0_i32_1 = arith.constant 0 : i32
    return %c0_i32, %c0_i32_0 : i32, i32
  }
  func.func @transform_2(%arg0: i32) -> (i32, i32) {
    %c0_i32 = arith.constant 0 : i32
    %c0_i32_0 = arith.constant 0 : i32
    %c0_i32_1 = arith.constant 0 : i32
    return %c0_i32, %c0_i32_0 : i32, i32
  }
  func.func @transform_3(%arg0: i32) -> (i32, i32) {
    %c0_i32 = arith.constant 0 : i32
    %c0_i32_0 = arith.constant 0 : i32
    return %arg0, %c0_i32 : i32, i32
  }
  func.func @transform_4(%arg0: i32) -> (i32, i32) {
    %c0_i32 = arith.constant 0 : i32
    %c0_i32_0 = arith.constant 0 : i32
    return %arg0, %c0_i32 : i32, i32
  }
}

</mosaic_0001>

<llo_original>
// kernel: tpu_custom_call.1
$region0: #{tpu_custom_call.1}
  #allocation0 [shape = 'u32[]', space=smem, size = 0x4, offset = 0x4, fixed_abs, tag = 'smem constant byte address 0x4 - core index']
  #allocation1 [shape = 'u32[144,128]{1,0:T(1,128)}', space=vmem, size = 0x12000, scoped, tag = 'internal scratch']
  %s0 = inlined_call_operand.hbm [shape: f32[384,128], index: 0, kind: input, shape index: {}]
  %s1 = inlined_call_operand.hbm [shape: f32[128,128], index: 1, kind: input, shape index: {}]
  %s2 = inlined_call_operand.vmem [shape: f32[1,128], index: 2, kind: input, shape index: {}]
  %s3 = inlined_call_operand.hbm [shape: f32[384,128], index: 3, kind: output, shape index: {0}]
  %s4 = inlined_call_operand.hbm [shape: bf16[384,128], index: 4, kind: output, shape index: {1}]
  %5 = xla_tuple %s3, %s4
  %s6 = sld [smem:[#allocation0]]
  $region38: #{tpu_custom_call.1} parent=0
    _
  %s8 = ssub.s32 1, %s6
  %s9 = scalar_select 0, %s8, %s6
  $region1: #{tpu_custom_call.1} parent=0
    #allocation2 [shape = 'u8[196608]{0}', space=vmem, size = 0x30000, scoped, tag = 'input window, operand 0, single buffered']
    #allocation3 [shape = 's32[1]{0}', space=sflag, size = 0x4, scoped, tag = 'scoped memory for tpu_custom_call.1']
    #allocation4 [shape = 's32[1]{0}', space=sflag, size = 0x4, scoped, tag = 'scoped memory for tpu_custom_call.1']
    #allocation5 [shape = 'u8[65536]{0}', space=vmem, size = 0x10000, scoped, tag = 'input window, operand 1, single buffered']
    #allocation6 [shape = 's32[1]{0}', space=sflag, size = 0x4, scoped, tag = 'scoped memory for tpu_custom_call.1']
    #allocation7 [shape = 'u8[196608]{0}', space=vmem, size = 0x30000, scoped, tag = 'output window, operand 0, single buffered']
    #allocation8 [shape = 'u8[98304]{0}', space=vmem, size = 0x18000, scoped, tag = 'output window, operand 1, single buffered']
    #allocation9 [shape = 's32[1]{0}', space=sflag, size = 0x4, scoped, tag = 'scoped memory for tpu_custom_call.1']
    %10 = vsyncpa [#allocation3], 0
    %11 = vsyncpa [#allocation6], 0
    %12 = vsyncpa [#allocation4], 0
    %13 = vsyncpa [#allocation9], 0
    // Predicated region
    $region2: #{tpu_custom_call.1} parent=1 // pred_check
      _
    $region3: #{tpu_custom_call.1} parent=1 // pred_check_branch
      %15 = sbr.rel (0) target = $region5
    $region4: #{tpu_custom_call.1} parent=1 // pred_region
      %s17 = ssub.s32 6144, 6144
      %18 = vsyncadd [#allocation3], %s17
      %s19 = sshll.u32 [#allocation2], 4
      %s20 = int_to_ptr.vmem [resolvable:$true] %s19
      %25 = dma.hbm_to_vmem [thread:$0]  %s0, 6144, %s20, [#allocation3], 128, 128, 8
    $region5: #{tpu_custom_call.1} parent=1 // pred_fallthru
      _
    // Predicated region
    $region6: #{tpu_custom_call.1} parent=1 // pred_check
      _
    $region7: #{tpu_custom_call.1} parent=1 // pred_check_branch
      %27 = sbr.rel (0) target = $region9
    $region8: #{tpu_custom_call.1} parent=1 // pred_region
      %s29 = ssub.s32 2048, 2048
      %30 = vsyncadd [#allocation6], %s29
      %s31 = sshll.u32 [#allocation5], 4
      %s32 = int_to_ptr.vmem [resolvable:$true] %s31
      %37 = dma.hbm_to_vmem [thread:$0]  %s1, 2048, %s32, [#allocation6], 128, 128, 8
    $region9: #{tpu_custom_call.1} parent=1 // pred_fallthru
      _
    // Predicated region
    $region10: #{tpu_custom_call.1} parent=1 // pred_check
      _
    $region11: #{tpu_custom_call.1} parent=1 // pred_check_branch
      %39 = sbr.rel (0) target = $region13
    $region12: #{tpu_custom_call.1} parent=1 // pred_region
      _
    $region13: #{tpu_custom_call.1} parent=1 // pred_fallthru
      _
    // Predicated region
    $region14: #{tpu_custom_call.1} parent=1 // pred_check
      _
    $region15: #{tpu_custom_call.1} parent=1 // pred_check_branch
      %41 = sbr.rel (0) target = $region17
    $region16: #{tpu_custom_call.1} parent=1 // pred_region
      %42 = dma.done [#allocation3], 6144
    $region17: #{tpu_custom_call.1} parent=1 // pred_fallthru
      _
    // Predicated region
    $region18: #{tpu_custom_call.1} parent=1 // pred_check
      _
    $region19: #{tpu_custom_call.1} parent=1 // pred_check_branch
      %44 = sbr.rel (0) target = $region21
    $region20: #{tpu_custom_call.1} parent=1 // pred_region
      %45 = dma.done [#allocation6], 2048
    $region21: #{tpu_custom_call.1} parent=1 // pred_fallthru
      _
    %v46 = vld [vmem:[#allocation2] sm:$0xff]
    %v47 = vld [vmem:[#allocation2 + $0x8] sm:$0xff]
    %v48 = vld [vmem:[#allocation2 + $0x10] sm:$0xff]
    %v49 = vld [vmem:[#allocation2 + $0x18] sm:$0xff]
    %v50 = vld [vmem:[#allocation2 + $0x20] sm:$0xff]
    %v51 = vld [vmem:[#allocation2 + $0x28] sm:$0xff]
    %v52 = vld [vmem:[#allocation2 + $0x30] sm:$0xff]
    %v53 = vld [vmem:[#allocation2 + $0x38] sm:$0xff]
    %v54 = vld [vmem:[#allocation2 + $0x40] sm:$0xff]
    %v55 = vld [vmem:[#allocation2 + $0x48] sm:$0xff]
    %v56 = vld [vmem:[#allocation2 + $0x50] sm:$0xff]
    %v57 = vld [vmem:[#allocation2 + $0x58] sm:$0xff]
    %v58 = vld [vmem:[#allocation2 + $0x60] sm:$0xff]
    %v59 = vld [vmem:[#allocation2 + $0x68] sm:$0xff]
    %v60 = vld [vmem:[#allocation2 + $0x70] sm:$0xff]
    %v61 = vld [vmem:[#allocation2 + $0x78] sm:$0xff]
    %v62 = vld [vmem:[#allocation2 + $0x80] sm:$0xff]
    %v63 = vld [vmem:[#allocation2 + $0x88] sm:$0xff]
    %v64 = vld [vmem:[#allocation2 + $0x90] sm:$0xff]
    %v65 = vld [vmem:[#allocation2 + $0x98] sm:$0xff]
    %v66 = vld [vmem:[#allocation2 + $0xa0] sm:$0xff]
    %v67 = vld [vmem:[#allocation2 + $0xa8] sm:$0xff]
    %v68 = vld [vmem:[#allocation2 + $0xb0] sm:$0xff]
    %v69 = vld [vmem:[#allocation2 + $0xb8] sm:$0xff]
    %v70 = vld [vmem:[#allocation2 + $0xc0] sm:$0xff]
    %v71 = vld [vmem:[#allocation2 + $0xc8] sm:$0xff]
    %v72 = vld [vmem:[#allocation2 + $0xd0] sm:$0xff]
    %v73 = vld [vmem:[#allocation2 + $0xd8] sm:$0xff]
    %v74 = vld [vmem:[#allocation2 + $0xe0] sm:$0xff]
    %v75 = vld [vmem:[#allocation2 + $0xe8] sm:$0xff]
    %v76 = vld [vmem:[#allocation2 + $0xf0] sm:$0xff]
    %v77 = vld [vmem:[#allocation2 + $0xf8] sm:$0xff]
    %v78 = vld [vmem:[#allocation2 + $0x100] sm:$0xff]
    %v79 = vld [vmem:[#allocation2 + $0x108] sm:$0xff]
    %v80 = vld [vmem:[#allocation2 + $0x110] sm:$0xff]
    %v81 = vld [vmem:[#allocation2 + $0x118] sm:$0xff]
    %v82 = vld [vmem:[#allocation2 + $0x120] sm:$0xff]
    %v83 = vld [vmem:[#allocation2 + $0x128] sm:$0xff]
    %v84 = vld [vmem:[#allocation2 + $0x130] sm:$0xff]
    %v85 = vld [vmem:[#allocation2 + $0x138] sm:$0xff]
    %v86 = vld [vmem:[#allocation2 + $0x140] sm:$0xff]
    %v87 = vld [vmem:[#allocation2 + $0x148] sm:$0xff]
    %v88 = vld [vmem:[#allocation2 + $0x150] sm:$0xff]
    %v89 = vld [vmem:[#allocation2 + $0x158] sm:$0xff]
    %v90 = vld [vmem:[#allocation2 + $0x160] sm:$0xff]
    %v91 = vld [vmem:[#allocation2 + $0x168] sm:$0xff]
    %v92 = vld [vmem:[#allocation2 + $0x170] sm:$0xff]
    %v93 = vld [vmem:[#allocation2 + $0x178] sm:$0xff]
    %v94 = vld [vmem:[#allocation5] sm:$0xff]
    %v95 = vld [vmem:[#allocation5 + $0x8] sm:$0xff]
    %v96 = vld [vmem:[#allocation5 + $0x10] sm:$0xff]
    %v97 = vld [vmem:[#allocation5 + $0x18] sm:$0xff]
    %v98 = vld [vmem:[#allocation5 + $0x20] sm:$0xff]
    %v99 = vld [vmem:[#allocation5 + $0x28] sm:$0xff]
    %v100 = vld [vmem:[#allocation5 + $0x30] sm:$0xff]
    %v101 = vld [vmem:[#allocation5 + $0x38] sm:$0xff]
    %v102 = vld [vmem:[#allocation5 + $0x40] sm:$0xff]
    %v103 = vld [vmem:[#allocation5 + $0x48] sm:$0xff]
    %v104 = vld [vmem:[#allocation5 + $0x50] sm:$0xff]
    %v105 = vld [vmem:[#allocation5 + $0x58] sm:$0xff]
    %v106 = vld [vmem:[#allocation5 + $0x60] sm:$0xff]
    %v107 = vld [vmem:[#allocation5 + $0x68] sm:$0xff]
    %v108 = vld [vmem:[#allocation5 + $0x70] sm:$0xff]
    %v109 = vld [vmem:[#allocation5 + $0x78] sm:$0xff]
    %v110 = vld [vmem:[%s2] sm:$0x1]
    %v112 = vlaneseq
    %v113 = vshrl.u32 %v112, 7
    %v114 = vsub.s32 0, %v113
    %v115 = vrot.slane %v110, %v114
    %117 = vmatprep.subr.mxu0 0.0
    %118 = vmatpush1.msra.mxu0 %v94
    %119 = vmatprep.subr.mxu0 0.0
    %120 = vmatpush1.msra.mxu0 %v95
    %121 = vmatprep.subr.mxu0 0.0
    %122 = vmatpush1.msra.mxu0 %v96
    %123 = vmatprep.subr.mxu0 0.0
    %124 = vmatpush1.msra.mxu0 %v97
    %125 = vmatprep.subr.mxu0 0.0
    %126 = vmatpush1.msra.mxu0 %v98
    %127 = vmatprep.subr.mxu0 0.0
    %128 = vmatpush1.msra.mxu0 %v99
    %129 = vmatprep.subr.mxu0 0.0
    %130 = vmatpush1.msra.mxu0 %v100
    %131 = vmatprep.subr.mxu0 0.0
    %132 = vmatpush1.msra.mxu0 %v101
    %133 = vmatprep.subr.mxu0 0.0
    %134 = vmatpush1.msra.mxu0 %v102
    %135 = vmatprep.subr.mxu0 0.0
    %136 = vmatpush1.msra.mxu0 %v103
    %137 = vmatprep.subr.mxu0 0.0
    %138 = vmatpush1.msra.mxu0 %v104
    %139 = vmatprep.subr.mxu0 0.0
    %140 = vmatpush1.msra.mxu0 %v105
    %141 = vmatprep.subr.mxu0 0.0
    %142 = vmatpush1.msra.mxu0 %v106
    %143 = vmatprep.subr.mxu0 0.0
    %144 = vmatpush1.msra.mxu0 %v107
    %145 = vmatprep.subr.mxu0 0.0
    %146 = vmatpush1.msra.mxu0 %v108
    %147 = vmatprep.subr.mxu0 0.0
    %148 = vmatpush1.msra.mxu0 %v109
    %149 = vmatprep.subr.mxu0 0.0
    %150 = vmatpush1.msra.mxu0 0.0
    %151 = vmatprep.subr.mxu0 0.0
    %152 = vmatpush1.msra.mxu0 0.0
    %153 = vmatprep.subr.mxu0 0.0
    %154 = vmatpush1.msra.mxu0 0.0
    %155 = vmatprep.subr.mxu0 0.0
    %156 = vmatpush1.msra.mxu0 0.0
    %157 = vmatprep.subr.mxu0 0.0
    %158 = vmatpush1.msra.mxu0 0.0
    %159 = vmatprep.subr.mxu0 0.0
    %160 = vmatpush1.msra.mxu0 0.0
    %161 = vmatprep.subr.mxu0 0.0
    %162 = vmatpush1.msra.mxu0 0.0
    %163 = vmatprep.subr.mxu0 0.0
    %164 = vmatpush1.msra.mxu0 0.0
    %165 = vmatprep.subr.mxu0 0.0
    %166 = vmatpush1.msra.mxu0 0.0
    %167 = vmatprep.subr.mxu0 0.0
    %168 = vmatpush1.msra.mxu0 0.0
    %169 = vmatprep.subr.mxu0 0.0
    %170 = vmatpush1.msra.mxu0 0.0
    %171 = vmatprep.subr.mxu0 0.0
    %172 = vmatpush1.msra.mxu0 0.0
    %173 = vmatprep.subr.mxu0 0.0
    %174 = vmatpush1.msra.mxu0 0.0
    %175 = vmatprep.subr.mxu0 0.0
    %176 = vmatpush1.msra.mxu0 0.0
    %177 = vmatprep.subr.mxu0 0.0
    %178 = vmatpush1.msra.mxu0 0.0
    %179 = vmatprep.subr.mxu0 0.0
    %180 = vmatpush1.msra.mxu0 0.0
    %181 = vmatprep.mubr.f32.mxu0 0.0
    %182 = vmatmul.mubr.f32.gmra.mrb[0].mxu0 %v46
    %v183 = vpop.f32.mrb[0].mxu0
    %v184 = vadd.f32 %v115, %v183
    %v185 = vpop.f32.mrb[0].mxu0
    %186 = vmatprep.mubr.f32.mxu0 0.0
    %187 = vmatmul.mubr.f32.gmra.mrb[0].mxu0 %v47
    %v188 = vpop.f32.mrb[0].mxu0
    %v189 = vadd.f32 %v115, %v188
    %v190 = vpop.f32.mrb[0].mxu0
    %191 = vmatprep.mubr.f32.mxu0 0.0
    %192 = vmatmul.mubr.f32.gmra.mrb[0].mxu0 %v48
    %v193 = vpop.f32.mrb[0].mxu0
    %v194 = vadd.f32 %v115, %v193
    %v195 = vpop.f32.mrb[0].mxu0
    %196 = vmatprep.mubr.f32.mxu0 0.0
    %197 = vmatmul.mubr.f32.gmra.mrb[0].mxu0 %v49
    %v198 = vpop.f32.mrb[0].mxu0
    %v199 = vadd.f32 %v115, %v198
    %v200 = vpop.f32.mrb[0].mxu0
    %201 = vmatprep.mubr.f32.mxu0 0.0
    %202 = vmatmul.mubr.f32.gmra.mrb[0].mxu0 %v50
    %v203 = vpop.f32.mrb[0].mxu0
    %v204 = vadd.f32 %v115, %v203
    %v205 = vpop.f32.mrb[0].mxu0
    %206 = vmatprep.mubr.f32.mxu0 0.0
    %207 = vmatmul.mubr.f32.gmra.mrb[0].mxu0 %v51
    %v208 = vpop.f32.mrb[0].mxu0
    %v209 = vadd.f32 %v115, %v208
    %v210 = vpop.f32.mrb[0].mxu0
    %211 = vmatprep.mubr.f32.mxu0 0.0
    %212 = vmatmul.mubr.f32.gmra.mrb[0].mxu0 %v52
    %v213 = vpop.f32.mrb[0].mxu0
    %v214 = vadd.f32 %v115, %v213
    %v215 = vpop.f32.mrb[0].mxu0
    %216 = vmatprep.mubr.f32.mxu0 0.0
    %217 = vmatmul.mubr.f32.gmra.mrb[0].mxu0 %v53
    %v218 = vpop.f32.mrb[0].mxu0
    %v219 = vadd.f32 %v115, %v218
    %v220 = vpop.f32.mrb[0].mxu0
    %221 = vmatprep.mubr.f32.mxu0 0.0
    %222 = vmatmul.mubr.f32.gmra.mrb[0].mxu0 %v54
    %v223 = vpop.f32.mrb[0].mxu0
    %v224 = vadd.f32 %v115, %v223
    %v225 = vpop.f32.mrb[0].mxu0
    %226 = vmatprep.mubr.f32.mxu0 0.0
    %227 = vmatmul.mubr.f32.gmra.mrb[0].mxu0 %v55
    %v228 = vpop.f32.mrb[0].mxu0
    %v229 = vadd.f32 %v115, %v228
    %v230 = vpop.f32.mrb[0].mxu0
    %231 = vmatprep.mubr.f32.mxu0 0.0
    %232 = vmatmul.mubr.f32.gmra.mrb[0].mxu0 %v56
    %v233 = vpop.f32.mrb[0].mxu0
    %v234 = vadd.f32 %v115, %v233
    %v235 = vpop.f32.mrb[0].mxu0
    %236 = vmatprep.mubr.f32.mxu0 0.0
    %237 = vmatmul.mubr.f32.gmra.mrb[0].mxu0 %v57
    %v238 = vpop.f32.mrb[0].mxu0
    %v239 = vadd.f32 %v115, %v238
    %v240 = vpop.f32.mrb[0].mxu0
    %241 = vmatprep.mubr.f32.mxu0 0.0
    %242 = vmatmul.mubr.f32.gmra.mrb[0].mxu0 %v58
    %v243 = vpop.f32.mrb[0].mxu0
    %v244 = vadd.f32 %v115, %v243
    %v245 = vpop.f32.mrb[0].mxu0
    %246 = vmatprep.mubr.f32.mxu0 0.0
    %247 = vmatmul.mubr.f32.gmra.mrb[0].mxu0 %v59
    %v248 = vpop.f32.mrb[0].mxu0
    %v249 = vadd.f32 %v115, %v248
    %v250 = vpop.f32.mrb[0].mxu0
    %251 = vmatprep.mubr.f32.mxu0 0.0
    %252 = vmatmul.mubr.f32.gmra.mrb[0].mxu0 %v60
    %v253 = vpop.f32.mrb[0].mxu0
    %v254 = vadd.f32 %v115, %v253
    %v255 = vpop.f32.mrb[0].mxu0
    %256 = vmatprep.mubr.f32.mxu0 0.0
    %257 = vmatmul.mubr.f32.gmra.mrb[0].mxu0 %v61
    %v258 = vpop.f32.mrb[0].mxu0
    %v259 = vadd.f32 %v115, %v258
    %v260 = vpop.f32.mrb[0].mxu0
    %261 = vmatprep.mubr.f32.mxu0 0.0
    %262 = vmatmul.mubr.f32.gmra.mrb[0].mxu0 %v62
    %v263 = vpop.f32.mrb[0].mxu0
    %v264 = vadd.f32 %v115, %v263
    %v265 = vpop.f32.mrb[0].mxu0
    %266 = vmatprep.mubr.f32.mxu0 0.0
    %267 = vmatmul.mubr.f32.gmra.mrb[0].mxu0 %v63
    %v268 = vpop.f32.mrb[0].mxu0
    %v269 = vadd.f32 %v115, %v268
    %v270 = vpop.f32.mrb[0].mxu0
    %271 = vmatprep.mubr.f32.mxu0 0.0
    %272 = vmatmul.mubr.f32.gmra.mrb[0].mxu0 %v64
    %v273 = vpop.f32.mrb[0].mxu0
    %v274 = vadd.f32 %v115, %v273
    %v275 = vpop.f32.mrb[0].mxu0
    %276 = vmatprep.mubr.f32.mxu0 0.0
    %277 = vmatmul.mubr.f32.gmra.mrb[0].mxu0 %v65
    %v278 = vpop.f32.mrb[0].mxu0
    %v279 = vadd.f32 %v115, %v278
    %v280 = vpop.f32.mrb[0].mxu0
    %281 = vmatprep.mubr.f32.mxu0 0.0
    %282 = vmatmul.mubr.f32.gmra.mrb[0].mxu0 %v66
    %v283 = vpop.f32.mrb[0].mxu0
    %v284 = vadd.f32 %v115, %v283
    %v285 = vpop.f32.mrb[0].mxu0
    %286 = vmatprep.mubr.f32.mxu0 0.0
    %287 = vmatmul.mubr.f32.gmra.mrb[0].mxu0 %v67
    %v288 = vpop.f32.mrb[0].mxu0
    %v289 = vadd.f32 %v115, %v288
    %v290 = vpop.f32.mrb[0].mxu0
    %291 = vmatprep.mubr.f32.mxu0 0.0
    %292 = vmatmul.mubr.f32.gmra.mrb[0].mxu0 %v68
    %v293 = vpop.f32.mrb[0].mxu0
    %v294 = vadd.f32 %v115, %v293
    %v295 = vpop.f32.mrb[0].mxu0
    %296 = vmatprep.mubr.f32.mxu0 0.0
    %297 = vmatmul.mubr.f32.gmra.mrb[0].mxu0 %v69
    %v298 = vpop.f32.mrb[0].mxu0
    %v299 = vadd.f32 %v115, %v298
    %v300 = vpop.f32.mrb[0].mxu0
    %301 = vmatprep.mubr.f32.mxu0 0.0
    %302 = vmatmul.mubr.f32.gmra.mrb[0].mxu0 %v70
    %v303 = vpop.f32.mrb[0].mxu0
    %v304 = vadd.f32 %v115, %v303
    %v305 = vpop.f32.mrb[0].mxu0
    %306 = vmatprep.mubr.f32.mxu0 0.0
    %307 = vmatmul.mubr.f32.gmra.mrb[0].mxu0 %v71
    %v308 = vpop.f32.mrb[0].mxu0
    %v309 = vadd.f32 %v115, %v308
    %v310 = vpop.f32.mrb[0].mxu0
    %311 = vmatprep.mubr.f32.mxu0 0.0
    %312 = vmatmul.mubr.f32.gmra.mrb[0].mxu0 %v72
    %v313 = vpop.f32.mrb[0].mxu0
    %v314 = vadd.f32 %v115, %v313
    %v315 = vpop.f32.mrb[0].mxu0
    %316 = vmatprep.mubr.f32.mxu0 0.0
    %317 = vmatmul.mubr.f32.gmra.mrb[0].mxu0 %v73
    %v318 = vpop.f32.mrb[0].mxu0
    %v319 = vadd.f32 %v115, %v318
    %v320 = vpop.f32.mrb[0].mxu0
    %321 = vmatprep.mubr.f32.mxu0 0.0
    %322 = vmatmul.mubr.f32.gmra.mrb[0].mxu0 %v74
    %v323 = vpop.f32.mrb[0].mxu0
    %v324 = vadd.f32 %v115, %v323
    %v325 = vpop.f32.mrb[0].mxu0
    %326 = vmatprep.mubr.f32.mxu0 0.0
    %327 = vmatmul.mubr.f32.gmra.mrb[0].mxu0 %v75
    %v328 = vpop.f32.mrb[0].mxu0
    %v329 = vadd.f32 %v115, %v328
    %v330 = vpop.f32.mrb[0].mxu0
    %331 = vmatprep.mubr.f32.mxu0 0.0
    %332 = vmatmul.mubr.f32.gmra.mrb[0].mxu0 %v76
    %v333 = vpop.f32.mrb[0].mxu0
    %v334 = vadd.f32 %v115, %v333
    %v335 = vpop.f32.mrb[0].mxu0
    %336 = vmatprep.mubr.f32.mxu0 0.0
    %337 = vmatmul.mubr.f32.gmra.mrb[0].mxu0 %v77
    %v338 = vpop.f32.mrb[0].mxu0
    %v339 = vadd.f32 %v115, %v338
    %v340 = vpop.f32.mrb[0].mxu0
    %341 = vmatprep.mubr.f32.mxu0 0.0
    %342 = vmatmul.mubr.f32.gmra.mrb[0].mxu0 %v78
    %v343 = vpop.f32.mrb[0].mxu0
    %v344 = vadd.f32 %v115, %v343
    %v345 = vpop.f32.mrb[0].mxu0
    %346 = vmatprep.mubr.f32.mxu0 0.0
    %347 = vmatmul.mubr.f32.gmra.mrb[0].mxu0 %v79
    %v348 = vpop.f32.mrb[0].mxu0
    %v349 = vadd.f32 %v115, %v348
    %v350 = vpop.f32.mrb[0].mxu0
    %351 = vmatprep.mubr.f32.mxu0 0.0
    %352 = vmatmul.mubr.f32.gmra.mrb[0].mxu0 %v80
    %v353 = vpop.f32.mrb[0].mxu0
    %v354 = vadd.f32 %v115, %v353
    %v355 = vpop.f32.mrb[0].mxu0
    %356 = vmatprep.mubr.f32.mxu0 0.0
    %357 = vmatmul.mubr.f32.gmra.mrb[0].mxu0 %v81
    %v358 = vpop.f32.mrb[0].mxu0
    %v359 = vadd.f32 %v115, %v358
    %v360 = vpop.f32.mrb[0].mxu0
    %361 = vmatprep.mubr.f32.mxu0 0.0
    %362 = vmatmul.mubr.f32.gmra.mrb[0].mxu0 %v82
    %v363 = vpop.f32.mrb[0].mxu0
    %v364 = vadd.f32 %v115, %v363
    %v365 = vpop.f32.mrb[0].mxu0
    %366 = vmatprep.mubr.f32.mxu0 0.0
    %367 = vmatmul.mubr.f32.gmra.mrb[0].mxu0 %v83
    %v368 = vpop.f32.mrb[0].mxu0
    %v369 = vadd.f32 %v115, %v368
    %v370 = vpop.f32.mrb[0].mxu0
    %371 = vmatprep.mubr.f32.mxu0 0.0
    %372 = vmatmul.mubr.f32.gmra.mrb[0].mxu0 %v84
    %v373 = vpop.f32.mrb[0].mxu0
    %v374 = vadd.f32 %v115, %v373
    %v375 = vpop.f32.mrb[0].mxu0
    %376 = vmatprep.mubr.f32.mxu0 0.0
    %377 = vmatmul.mubr.f32.gmra.mrb[0].mxu0 %v85
    %v378 = vpop.f32.mrb[0].mxu0
    %v379 = vadd.f32 %v115, %v378
    %v380 = vpop.f32.mrb[0].mxu0
    %381 = vmatprep.mubr.f32.mxu0 0.0
    %382 = vmatmul.mubr.f32.gmra.mrb[0].mxu0 %v86
    %v383 = vpop.f32.mrb[0].mxu0
    %v384 = vadd.f32 %v115, %v383
    %v385 = vpop.f32.mrb[0].mxu0
    %386 = vmatprep.mubr.f32.mxu0 0.0
    %387 = vmatmul.mubr.f32.gmra.mrb[0].mxu0 %v87
    %v388 = vpop.f32.mrb[0].mxu0
    %v389 = vadd.f32 %v115, %v388
    %v390 = vpop.f32.mrb[0].mxu0
    %391 = vmatprep.mubr.f32.mxu0 0.0
    %392 = vmatmul.mubr.f32.gmra.mrb[0].mxu0 %v88
    %v393 = vpop.f32.mrb[0].mxu0
    %v394 = vadd.f32 %v115, %v393
    %v395 = vpop.f32.mrb[0].mxu0
    %396 = vmatprep.mubr.f32.mxu0 0.0
    %397 = vmatmul.mubr.f32.gmra.mrb[0].mxu0 %v89
    %v398 = vpop.f32.mrb[0].mxu0
    %v399 = vadd.f32 %v115, %v398
    %v400 = vpop.f32.mrb[0].mxu0
    %401 = vmatprep.mubr.f32.mxu0 0.0
    %402 = vmatmul.mubr.f32.gmra.mrb[0].mxu0 %v90
    %v403 = vpop.f32.mrb[0].mxu0
    %v404 = vadd.f32 %v115, %v403
    %v405 = vpop.f32.mrb[0].mxu0
    %406 = vmatprep.mubr.f32.mxu0 0.0
    %407 = vmatmul.mubr.f32.gmra.mrb[0].mxu0 %v91
    %v408 = vpop.f32.mrb[0].mxu0
    %v409 = vadd.f32 %v115, %v408
    %v410 = vpop.f32.mrb[0].mxu0
    %411 = vmatprep.mubr.f32.mxu0 0.0
    %412 = vmatmul.mubr.f32.gmra.mrb[0].mxu0 %v92
    %v413 = vpop.f32.mrb[0].mxu0
    %v414 = vadd.f32 %v115, %v413
    %v415 = vpop.f32.mrb[0].mxu0
    %416 = vmatprep.mubr.f32.mxu0 0.0
    %417 = vmatmul.mubr.f32.gmra.mrb[0].mxu0 %v93
    %v418 = vpop.f32.mrb[0].mxu0
    %v419 = vadd.f32 %v115, %v418
    %v420 = vpop.f32.mrb[0].mxu0
    %421 = vdwg.mxu0
    %422 = vst [vmem:[#allocation7] sm:$0xff] %v184
    %423 = vst [vmem:[#allocation7 + $0x8] sm:$0xff] %v189
    %424 = vst [vmem:[#allocation7 + $0x10] sm:$0xff] %v194
    %425 = vst [vmem:[#allocation7 + $0x18] sm:$0xff] %v199
    %426 = vst [vmem:[#allocation7 + $0x20] sm:$0xff] %v204
    %427 = vst [vmem:[#allocation7 + $0x28] sm:$0xff] %v209
    %428 = vst [vmem:[#allocation7 + $0x30] sm:$0xff] %v214
    %429 = vst [vmem:[#allocation7 + $0x38] sm:$0xff] %v219
    %430 = vst [vmem:[#allocation7 + $0x40] sm:$0xff] %v224
    %431 = vst [vmem:[#allocation7 + $0x48] sm:$0xff] %v229
    %432 = vst [vmem:[#allocation7 + $0x50] sm:$0xff] %v234
    %433 = vst [vmem:[#allocation7 + $0x58] sm:$0xff] %v239
    %434 = vst [vmem:[#allocation7 + $0x60] sm:$0xff] %v244
    %435 = vst [vmem:[#allocation7 + $0x68] sm:$0xff] %v249
    %436 = vst [vmem:[#allocation7 + $0x70] sm:$0xff] %v254
    %437 = vst [vmem:[#allocation7 + $0x78] sm:$0xff] %v259
    %438 = vst [vmem:[#allocation7 + $0x80] sm:$0xff] %v264
    %439 = vst [vmem:[#allocation7 + $0x88] sm:$0xff] %v269
    %440 = vst [vmem:[#allocation7 + $0x90] sm:$0xff] %v274
    %441 = vst [vmem:[#allocation7 + $0x98] sm:$0xff] %v279
    %442 = vst [vmem:[#allocation7 + $0xa0] sm:$0xff] %v284
    %443 = vst [vmem:[#allocation7 + $0xa8] sm:$0xff] %v289
    %444 = vst [vmem:[#allocation7 + $0xb0] sm:$0xff] %v294
    %445 = vst [vmem:[#allocation7 + $0xb8] sm:$0xff] %v299
    %446 = vst [vmem:[#allocation7 + $0xc0] sm:$0xff] %v304
    %447 = vst [vmem:[#allocation7 + $0xc8] sm:$0xff] %v309
    %448 = vst [vmem:[#allocation7 + $0xd0] sm:$0xff] %v314
    %449 = vst [vmem:[#allocation7 + $0xd8] sm:$0xff] %v319
    %450 = vst [vmem:[#allocation7 + $0xe0] sm:$0xff] %v324
    %451 = vst [vmem:[#allocation7 + $0xe8] sm:$0xff] %v329
    %452 = vst [vmem:[#allocation7 + $0xf0] sm:$0xff] %v334
    %453 = vst [vmem:[#allocation7 + $0xf8] sm:$0xff] %v339
    %454 = vst [vmem:[#allocation7 + $0x100] sm:$0xff] %v344
    %455 = vst [vmem:[#allocation7 + $0x108] sm:$0xff] %v349
    %456 = vst [vmem:[#allocation7 + $0x110] sm:$0xff] %v354
    %457 = vst [vmem:[#allocation7 + $0x118] sm:$0xff] %v359
    %458 = vst [vmem:[#allocation7 + $0x120] sm:$0xff] %v364
    %459 = vst [vmem:[#allocation7 + $0x128] sm:$0xff] %v369
    %460 = vst [vmem:[#allocation7 + $0x130] sm:$0xff] %v374
    %461 = vst [vmem:[#allocation7 + $0x138] sm:$0xff] %v379
    %462 = vst [vmem:[#allocation7 + $0x140] sm:$0xff] %v384
    %463 = vst [vmem:[#allocation7 + $0x148] sm:$0xff] %v389
    %464 = vst [vmem:[#allocation7 + $0x150] sm:$0xff] %v394
    %465 = vst [vmem:[#allocation7 + $0x158] sm:$0xff] %v399
    %466 = vst [vmem:[#allocation7 + $0x160] sm:$0xff] %v404
    %467 = vst [vmem:[#allocation7 + $0x168] sm:$0xff] %v409
    %468 = vst [vmem:[#allocation7 + $0x170] sm:$0xff] %v414
    %469 = vst [vmem:[#allocation7 + $0x178] sm:$0xff] %v419
    %v470 = vpack.c.bf16 %v189, %v184
    %v471 = vpack.c.bf16 %v199, %v194
    %v472 = vpack.c.bf16 %v209, %v204
    %v473 = vpack.c.bf16 %v219, %v214
    %v474 = vpack.c.bf16 %v229, %v224
    %v475 = vpack.c.bf16 %v239, %v234
    %v476 = vpack.c.bf16 %v249, %v244
    %v477 = vpack.c.bf16 %v259, %v254
    %v478 = vpack.c.bf16 %v269, %v264
    %v479 = vpack.c.bf16 %v279, %v274
    %v480 = vpack.c.bf16 %v289, %v284
    %v481 = vpack.c.bf16 %v299, %v294
    %v482 = vpack.c.bf16 %v309, %v304
    %v483 = vpack.c.bf16 %v319, %v314
    %v484 = vpack.c.bf16 %v329, %v324
    %v485 = vpack.c.bf16 %v339, %v334
    %v486 = vpack.c.bf16 %v349, %v344
    %v487 = vpack.c.bf16 %v359, %v354
    %v488 = vpack.c.bf16 %v369, %v364
    %v489 = vpack.c.bf16 %v379, %v374
    %v490 = vpack.c.bf16 %v389, %v384
    %v491 = vpack.c.bf16 %v399, %v394
    %v492 = vpack.c.bf16 %v409, %v404
    %v493 = vpack.c.bf16 %v419, %v414
    %v518 = vunpack.c.l.b16 %v470
    %v519 = vunpack.c.h.b16 %v470
    %v520 = vunpack.c.l.b16 %v471
    %v521 = vunpack.c.h.b16 %v471
    %v522 = vunpack.c.l.b16 %v472
    %v523 = vunpack.c.h.b16 %v472
    %v524 = vunpack.c.l.b16 %v473
    %v525 = vunpack.c.h.b16 %v473
    %v526 = vunpack.c.l.b16 %v474
    %v527 = vunpack.c.h.b16 %v474
    %v528 = vunpack.c.l.b16 %v475
    %v529 = vunpack.c.h.b16 %v475
    %v530 = vunpack.c.l.b16 %v476
    %v531 = vunpack.c.h.b16 %v476
    %v532 = vunpack.c.l.b16 %v477
    %v533 = vunpack.c.h.b16 %v477
    %v534 = vunpack.c.l.b16 %v478
    %v535 = vunpack.c.h.b16 %v478
    %v536 = vunpack.c.l.b16 %v479
    %v537 = vunpack.c.h.b16 %v479
    %v538 = vunpack.c.l.b16 %v480
    %v539 = vunpack.c.h.b16 %v480
    %v540 = vunpack.c.l.b16 %v481
    %v541 = vunpack.c.h.b16 %v481
    %v542 = vunpack.c.l.b16 %v482
    %v543 = vunpack.c.h.b16 %v482
    %v544 = vunpack.c.l.b16 %v483
    %v545 = vunpack.c.h.b16 %v483
    %v546 = vunpack.c.l.b16 %v484
    %v547 = vunpack.c.h.b16 %v484
    %v548 = vunpack.c.l.b16 %v485
    %v549 = vunpack.c.h.b16 %v485
    %v550 = vunpack.c.l.b16 %v486
    %v551 = vunpack.c.h.b16 %v486
    %v552 = vunpack.c.l.b16 %v487
    %v553 = vunpack.c.h.b16 %v487
    %v554 = vunpack.c.l.b16 %v488
    %v555 = vunpack.c.h.b16 %v488
    %v556 = vunpack.c.l.b16 %v489
    %v557 = vunpack.c.h.b16 %v489
    %v558 = vunpack.c.l.b16 %v490
    %v559 = vunpack.c.h.b16 %v490
    %v560 = vunpack.c.l.b16 %v491
    %v561 = vunpack.c.h.b16 %v491
    %v562 = vunpack.c.l.b16 %v492
    %v563 = vunpack.c.h.b16 %v492
    %v564 = vunpack.c.l.b16 %v493
    %v565 = vunpack.c.h.b16 %v493
    %v566 = vpack.c.b16 %v518, %v518
    %v567 = vpack.c.b16 %v519, %v519
    %v568 = vpack.c.b16 %v520, %v520
    %v569 = vpack.c.b16 %v521, %v521
    %v570 = vpack.c.b16 %v522, %v522
    %v571 = vpack.c.b16 %v523, %v523
    %v572 = vpack.c.b16 %v524, %v524
    %v573 = vpack.c.b16 %v525, %v525
    %v574 = vpack.c.b16 %v526, %v526
    %v575 = vpack.c.b16 %v527, %v527
    %v576 = vpack.c.b16 %v528, %v528
    %v577 = vpack.c.b16 %v529, %v529
    %v578 = vpack.c.b16 %v530, %v530
    %v579 = vpack.c.b16 %v531, %v531
    %v580 = vpack.c.b16 %v532, %v532
    %v581 = vpack.c.b16 %v533, %v533
    %v582 = vpack.c.b16 %v534, %v534
    %v583 = vpack.c.b16 %v535, %v535
    %v584 = vpack.c.b16 %v536, %v536
    %v585 = vpack.c.b16 %v537, %v537
    %v586 = vpack.c.b16 %v538, %v538
    %v587 = vpack.c.b16 %v539, %v539
    %v588 = vpack.c.b16 %v540, %v540
    %v589 = vpack.c.b16 %v541, %v541
    %v590 = vpack.c.b16 %v542, %v542
    %v591 = vpack.c.b16 %v543, %v543
    %v592 = vpack.c.b16 %v544, %v544
    %v593 = vpack.c.b16 %v545, %v545
    %v594 = vpack.c.b16 %v546, %v546
    %v595 = vpack.c.b16 %v547, %v547
    %v596 = vpack.c.b16 %v548, %v548
    %v597 = vpack.c.b16 %v549, %v549
    %v598 = vpack.c.b16 %v550, %v550
    %v599 = vpack.c.b16 %v551, %v551
    %v600 = vpack.c.b16 %v552, %v552
    %v601 = vpack.c.b16 %v553, %v553
    %v602 = vpack.c.b16 %v554, %v554
    %v603 = vpack.c.b16 %v555, %v555
    %v604 = vpack.c.b16 %v556, %v556
    %v605 = vpack.c.b16 %v557, %v557
    %v606 = vpack.c.b16 %v558, %v558
    %v607 = vpack.c.b16 %v559, %v559
    %v608 = vpack.c.b16 %v560, %v560
    %v609 = vpack.c.b16 %v561, %v561
    %v610 = vpack.c.b16 %v562, %v562
    %v611 = vpack.c.b16 %v563, %v563
    %v612 = vpack.c.b16 %v564, %v564
    %v613 = vpack.c.b16 %v565, %v565
    %662 = vst [vmem:[#allocation8] sm:$0xf] %v566
    %663 = vst [vmem:[#allocation8 + $0x4] sm:$0xf] %v567
    %664 = vst [vmem:[#allocation8 + $0x8] sm:$0xf] %v568
    %665 = vst [vmem:[#allocation8 + $0xc] sm:$0xf] %v569
    %666 = vst [vmem:[#allocation8 + $0x10] sm:$0xf] %v570
    %667 = vst [vmem:[#allocation8 + $0x14] sm:$0xf] %v571
    %668 = vst [vmem:[#allocation8 + $0x18] sm:$0xf] %v572
    %669 = vst [vmem:[#allocation8 + $0x1c] sm:$0xf] %v573
    %670 = vst [vmem:[#allocation8 + $0x20] sm:$0xf] %v574
    %671 = vst [vmem:[#allocation8 + $0x24] sm:$0xf] %v575
    %672 = vst [vmem:[#allocation8 + $0x28] sm:$0xf] %v576
    %673 = vst [vmem:[#allocation8 + $0x2c] sm:$0xf] %v577
    %674 = vst [vmem:[#allocation8 + $0x30] sm:$0xf] %v578
    %675 = vst [vmem:[#allocation8 + $0x34] sm:$0xf] %v579
    %676 = vst [vmem:[#allocation8 + $0x38] sm:$0xf] %v580
    %677 = vst [vmem:[#allocation8 + $0x3c] sm:$0xf] %v581
    %678 = vst [vmem:[#allocation8 + $0x40] sm:$0xf] %v582
    %679 = vst [vmem:[#allocation8 + $0x44] sm:$0xf] %v583
    %680 = vst [vmem:[#allocation8 + $0x48] sm:$0xf] %v584
    %681 = vst [vmem:[#allocation8 + $0x4c] sm:$0xf] %v585
    %682 = vst [vmem:[#allocation8 + $0x50] sm:$0xf] %v586
    %683 = vst [vmem:[#allocation8 + $0x54] sm:$0xf] %v587
    %684 = vst [vmem:[#allocation8 + $0x58] sm:$0xf] %v588
    %685 = vst [vmem:[#allocation8 + $0x5c] sm:$0xf] %v589
    %686 = vst [vmem:[#allocation8 + $0x60] sm:$0xf] %v590
    %687 = vst [vmem:[#allocation8 + $0x64] sm:$0xf] %v591
    %688 = vst [vmem:[#allocation8 + $0x68] sm:$0xf] %v592
    %689 = vst [vmem:[#allocation8 + $0x6c] sm:$0xf] %v593
    %690 = vst [vmem:[#allocation8 + $0x70] sm:$0xf] %v594
    %691 = vst [vmem:[#allocation8 + $0x74] sm:$0xf] %v595
    %692 = vst [vmem:[#allocation8 + $0x78] sm:$0xf] %v596
    %693 = vst [vmem:[#allocation8 + $0x7c] sm:$0xf] %v597
    %694 = vst [vmem:[#allocation8 + $0x80] sm:$0xf] %v598
    %695 = vst [vmem:[#allocation8 + $0x84] sm:$0xf] %v599
    %696 = vst [vmem:[#allocation8 + $0x88] sm:$0xf] %v600
    %697 = vst [vmem:[#allocation8 + $0x8c] sm:$0xf] %v601
    %698 = vst [vmem:[#allocation8 + $0x90] sm:$0xf] %v602
    %699 = vst [vmem:[#allocation8 + $0x94] sm:$0xf] %v603
    %700 = vst [vmem:[#allocation8 + $0x98] sm:$0xf] %v604
    %701 = vst [vmem:[#allocation8 + $0x9c] sm:$0xf] %v605
    %702 = vst [vmem:[#allocation8 + $0xa0] sm:$0xf] %v606
    %703 = vst [vmem:[#allocation8 + $0xa4] sm:$0xf] %v607
    %704 = vst [vmem:[#allocation8 + $0xa8] sm:$0xf] %v608
    %705 = vst [vmem:[#allocation8 + $0xac] sm:$0xf] %v609
    %706 = vst [vmem:[#allocation8 + $0xb0] sm:$0xf] %v610
    %707 = vst [vmem:[#allocation8 + $0xb4] sm:$0xf] %v611
    %708 = vst [vmem:[#allocation8 + $0xb8] sm:$0xf] %v612
    %709 = vst [vmem:[#allocation8 + $0xbc] sm:$0xf] %v613
    // Predicated region
    $region22: #{tpu_custom_call.1} parent=1 // pred_check
      _
    $region23: #{tpu_custom_call.1} parent=1 // pred_check_branch
      %711 = sbr.rel (0) target = $region25
    $region24: #{tpu_custom_call.1} parent=1 // pred_region
      %s713 = ssub.s32 6144, 6144
      %714 = vsyncadd [#allocation4], %s713
      %s715 = sshll.u32 [#allocation7], 4
      %s716 = int_to_ptr.vmem [resolvable:$true] %s715
      %721 = dma.vmem_to_hbm [thread:$0]  %s716, 6144, %s3, [#allocation4], 128, 128, 8
    $region25: #{tpu_custom_call.1} parent=1 // pred_fallthru
      _
    // Predicated region
    $region26: #{tpu_custom_call.1} parent=1 // pred_check
      _
    $region27: #{tpu_custom_call.1} parent=1 // pred_check_branch
      %723 = sbr.rel (0) target = $region29
    $region28: #{tpu_custom_call.1} parent=1 // pred_region
      %s725 = ssub.s32 3072, 3072
      %726 = vsyncadd [#allocation9], %s725
      %s727 = sshll.u32 [#allocation8], 4
      %s728 = int_to_ptr.vmem [resolvable:$true] %s727
      %733 = dma.vmem_to_hbm [thread:$0]  %s728, 3072, %s4, [#allocation9], 64, 64, 4
    $region29: #{tpu_custom_call.1} parent=1 // pred_fallthru
      _
    // Predicated region
    $region30: #{tpu_custom_call.1} parent=1 // pred_check
      _
    $region31: #{tpu_custom_call.1} parent=1 // pred_check_branch
      %735 = sbr.rel (0) target = $region33
    $region32: #{tpu_custom_call.1} parent=1 // pred_region
      %736 = dma.done [#allocation4], 6144
    $region33: #{tpu_custom_call.1} parent=1 // pred_fallthru
      _
    // Predicated region
    $region34: #{tpu_custom_call.1} parent=1 // pred_check
      _
    $region35: #{tpu_custom_call.1} parent=1 // pred_check_branch
      %738 = sbr.rel (0) target = $region37
    $region36: #{tpu_custom_call.1} parent=1 // pred_region
      %739 = dma.done [#allocation9], 3072
    $region37: #{tpu_custom_call.1} parent=1 // pred_fallthru
      _
    %740 = vsyncpa [#allocation3], 1
    %741 = vsyncpa [#allocation6], 1
    %742 = vsyncpa [#allocation4], 1
    %743 = vsyncpa [#allocation9], 1

</llo_original>
